<compile_context>
chip_gen: v5e
topology: v5e:2x2
jax: 0.10.0
libtpu: 0.0.40
codegen_flags: <defaults>
</compile_context>

<pallas_src>
import jax
import jax.numpy as jnp
from jax.experimental import pallas as pl
from jax.experimental.pallas import tpu as pltpu


def _relu_linear_kernel(x_ref, w_ref, b_ref, o_ref):
    """One (i, j, k) grid step of y = relu(x @ W + b).

    The output block index is constant across k, so o_ref stays resident in
    VMEM and doubles as the f32 accumulator.
    """
    k = pl.program_id(2)
    last_k = pl.num_programs(2) - 1

    partial = jnp.dot(x_ref[...], w_ref[...], preferred_element_type=jnp.float32)

    @pl.when(k == 0)
    def _():
        # Fold the bias into the first partial product (broadcast over rows);
        # avoids a separate init + read-modify-write of the output block.
        o_ref[...] = partial + b_ref[...]

    @pl.when(k != 0)
    def _():
        o_ref[...] += partial

    @pl.when(k == last_k)
    def _():
        o_ref[...] = jnp.maximum(o_ref[...], 0.0)


def _round_up(x: int, m: int) -> int:
    return pl.cdiv(x, m) * m


def relu_linear(x, w, b, *, tm: int = 256, tn: int = 512, tk: int = 512):
    """relu(x @ w + b) via a tiled Pallas TPU matmul kernel.

    x: [M, K] float32,  w: [K, N] float32,  b: [N] float32  ->  [M, N] float32

    Tile defaults are MXU-aligned and sized so double-buffered inputs + the
    resident output accumulator stay comfortably inside VMEM on v5e/v6e/v7x
    (~4 MiB at tm=256, tn=512, tk=512 in f32).
    """
    M, K = x.shape
    K2, N = w.shape
    assert K == K2 and b.shape == (N,)

    x = x.astype(jnp.float32)
    w = w.astype(jnp.float32)
    b = b.astype(jnp.float32)

    # Clamp tiles to the (aligned) problem size: sublane axis multiple of 8,
    # lane axis multiple of 128 (the (8,128) vreg tile / MXU feed).
    tm = min(tm, _round_up(M, 8))
    tn = min(tn, _round_up(N, 128))
    tk = min(tk, _round_up(K, 128))

    # Pad ragged shapes with zeros (zeros in K contribute nothing to the dot;
    # padded M/N rows/cols are sliced away afterwards).
    Mp, Np, Kp = _round_up(M, tm), _round_up(N, tn), _round_up(K, tk)
    if (Mp, Kp) != (M, K):
        x = jnp.pad(x, ((0, Mp - M), (0, Kp - K)))
    if (Kp, Np) != (K, N):
        w = jnp.pad(w, ((0, Kp - K), (0, Np - N)))
    b2 = (jnp.pad(b, (0, Np - N)) if Np != N else b).reshape(1, Np)

    grid = (Mp // tm, Np // tn, Kp // tk)

    # VMEM footprint estimate: double-buffered x/w tiles + double-buffered
    # output block + bias slab; 2x headroom, floor at the smallest scoped default.
    est_bytes = 2 * (tm * tk + tk * tn) * 4 + 2 * tm * tn * 4 + 2 * tn * 4
    vmem_limit = min(max(2 * est_bytes, 16 * 1024 * 1024), 48 * 1024 * 1024)

    out = pl.pallas_call(
        _relu_linear_kernel,
        out_shape=jax.ShapeDtypeStruct((Mp, Np), jnp.float32),
        grid_spec=pltpu.PrefetchScalarGridSpec(
            num_scalar_prefetch=0,
            grid=grid,
            in_specs=[
                pl.BlockSpec((tm, tk), lambda i, j, k: (i, k)),   # x tile
                pl.BlockSpec((tk, tn), lambda i, j, k: (k, j)),   # w tile
                pl.BlockSpec((1, tn), lambda i, j, k: (0, j)),    # bias tile
            ],
            out_specs=pl.BlockSpec((tm, tn), lambda i, j, k: (i, j)),
        ),
        compiler_params=pltpu.CompilerParams(
            dimension_semantics=("parallel", "parallel", "arbitrary"),
            vmem_limit_bytes=vmem_limit,
        ),
    )(x, w, b2)

    if (Mp, Np) != (M, N):
        out = out[:M, :N]
    return out


class ReluLayerPallas:
    """JAX/Pallas equivalent of the PyTorch ReluLayer (Linear + ReLU)."""

    def __init__(self, in_features: int, out_features: int, bias: bool = True,
                 key=jax.random.PRNGKey(0)):
        self.in_features = in_features
        self.out_features = out_features
        k_w, k_b = jax.random.split(key)
        # Deterministic init mimicking nn.Linear's U(-1/sqrt(in), 1/sqrt(in)).
        bound = 1.0 / (in_features ** 0.5)
        # PyTorch weight layout is [out, in]; transpose once for the kernel.
        self.weight = jax.random.uniform(
            k_w, (out_features, in_features), jnp.float32, -bound, bound
        )
        if bias:
            self.bias = jax.random.uniform(
                k_b, (out_features,), jnp.float32, -bound, bound
            )
        else:
            self.bias = jnp.zeros((out_features,), jnp.float32)

    def __call__(self, x):
        # x: [..., in_features] -> [..., out_features]
        lead = x.shape[:-1]
        x2d = x.reshape((-1, self.in_features))
        w_t = self.weight.T  # [in, out]
        # TODO(synk): for compute-bound shapes on v6e/v7x, optionally cast
        # x/w to bfloat16 here (keep f32 accumulation) for the bf16 MXU path.
        y = relu_linear(x2d, w_t, self.bias)
        return y.reshape(lead + (self.out_features,))


if __name__ == "__main__":
    key = jax.random.PRNGKey(0)
    k_x, k_p = jax.random.split(key)

    batch, in_features, out_features = 8, 32, 128
    x = jax.random.normal(k_x, (batch, in_features), dtype=jnp.float32)

    layer = ReluLayerPallas(in_features, out_features, bias=True, key=k_p)
    y = layer(x)
    y = jax.block_until_ready(y)

    # Sanity check against a plain-JAX reference.
    ref = jnp.maximum(x @ layer.weight.T + layer.bias, 0.0)
    assert y.shape == (batch, out_features)
    assert jnp.allclose(y, ref, atol=1e-5, rtol=1e-5)

    # Also exercise a ragged, multi-k-step shape to cover the padded/tiled path.
    M2, K2, N2 = 300, 1000, 700
    x2 = jax.random.normal(jax.random.PRNGKey(1), (M2, K2), dtype=jnp.float32)
    w2 = jax.random.normal(jax.random.PRNGKey(2), (K2, N2), dtype=jnp.float32) * 0.02
    b2 = jax.random.normal(jax.random.PRNGKey(3), (N2,), dtype=jnp.float32)
    y2 = jax.block_until_ready(relu_linear(x2, w2, b2))
    ref2 = jnp.maximum(x2 @ w2 + b2, 0.0)
    assert jnp.allclose(y2, ref2, atol=1e-3, rtol=1e-3)

    print("KERNEL_OK")
</pallas_src>

<mosaic_0001>
module attributes {stable_mosaic.version = 11 : i64} {
  func.func @_relu_linear_kernel(%arg0: i32, %arg1: i32, %arg2: i32, %arg3: memref<8x128xf32, #tpu.memory_space<vmem>>, %arg4: memref<128x128xf32, #tpu.memory_space<vmem>>, %arg5: memref<1x128xf32, #tpu.memory_space<vmem>>, %arg6: memref<8x128xf32, #tpu.memory_space<vmem>>) attributes {dimension_semantics = [#tpu.dimension_semantics<parallel>, #tpu.dimension_semantics<parallel>, #tpu.dimension_semantics<arbitrary>], iteration_bounds = array<i64: 1, 1, 1>, scalar_prefetch = 0 : i64, scratch_operands = 0 : i64, tpu.core_type = #tpu.core_type<tc>, window_params = [{transform_indices = @transform_0, window_bounds = array<i64: 8, 128>}, {transform_indices = @transform_1, window_bounds = array<i64: 128, 128>}, {transform_indices = @transform_2, window_bounds = array<i64: 1, 128>}, {transform_indices = @transform_3, window_bounds = array<i64: 8, 128>}]} {
    %c0 = arith.constant 0 : index
    %c0_0 = arith.constant 0 : index
    %0 = vector.load %arg3[%c0, %c0_0] : memref<8x128xf32, #tpu.memory_space<vmem>>, vector<8x128xf32>
    %c0_1 = arith.constant 0 : index
    %c0_2 = arith.constant 0 : index
    %1 = vector.load %arg4[%c0_1, %c0_2] : memref<128x128xf32, #tpu.memory_space<vmem>>, vector<128x128xf32>
    %cst = arith.constant dense<0.000000e+00> : vector<8x128xf32>
    %2 = tpu.matmul %0, %1, %cst {dimension_numbers = #tpu.dot_dimension_numbers<[1], [0], [0], [1], [0, 0, 1, 1], [], []>} : vector<8x128xf32>, vector<128x128xf32>, vector<8x128xf32> -> vector<8x128xf32>
    %c0_i32 = arith.constant 0 : i32
    %3 = arith.cmpi eq, %arg2, %c0_i32 : i32
    %4 = arith.extui %3 : i1 to i32
    %c0_i32_3 = arith.constant 0 : i32
    %5 = arith.cmpi ne, %4, %c0_i32_3 : i32
    scf.if %5 {
      %c0_8 = arith.constant 0 : index
      %c0_9 = arith.constant 0 : index
      %12 = vector.load %arg5[%c0_8, %c0_9] : memref<1x128xf32, #tpu.memory_space<vmem>>, vector<1x128xf32>
      %13 = vector.broadcast %12 : vector<1x128xf32> to vector<8x128xf32>
      %14 = arith.addf %2, %13 : vector<8x128xf32>
      %c0_10 = arith.constant 0 : index
      %c0_11 = arith.constant 0 : index
      %15 = vector.load %arg6[%c0_10, %c0_11] : memref<8x128xf32, #tpu.memory_space<vmem>>, vector<8x128xf32>
      tpu.vector_store %arg6[%c0_10, %c0_11], %14 {strides = array<i32>} : memref<8x128xf32, #tpu.memory_space<vmem>>, vector<8x128xf32>,
    } else {
    }
    %c0_i32_4 = arith.constant 0 : i32
    %6 = arith.cmpi ne, %arg2, %c0_i32_4 : i32
    %7 = arith.extui %6 : i1 to i32
    %c0_i32_5 = arith.constant 0 : i32
    %8 = arith.cmpi ne, %7, %c0_i32_5 : i32
    scf.if %8 {
      %c0_8 = arith.constant 0 : index
      %c0_9 = arith.constant 0 : index
      %12 = vector.load %arg6[%c0_8, %c0_9] : memref<8x128xf32, #tpu.memory_space<vmem>>, vector<8x128xf32>
      %13 = arith.addf %12, %2 : vector<8x128xf32>
      %c0_10 = arith.constant 0 : index
      %c0_11 = arith.constant 0 : index
      %14 = vector.load %arg6[%c0_10, %c0_11] : memref<8x128xf32, #tpu.memory_space<vmem>>, vector<8x128xf32>
      tpu.vector_store %arg6[%c0_10, %c0_11], %13 {strides = array<i32>} : memref<8x128xf32, #tpu.memory_space<vmem>>, vector<8x128xf32>,
    } else {
    }
    %c0_i32_6 = arith.constant 0 : i32
    %9 = arith.cmpi eq, %arg2, %c0_i32_6 : i32
    %10 = arith.extui %9 : i1 to i32
    %c0_i32_7 = arith.constant 0 : i32
    %11 = arith.cmpi ne, %10, %c0_i32_7 : i32
    scf.if %11 {
      %c0_8 = arith.constant 0 : index
      %c0_9 = arith.constant 0 : index
      %12 = vector.load %arg6[%c0_8, %c0_9] : memref<8x128xf32, #tpu.memory_space<vmem>>, vector<8x128xf32>
      %cst_10 = arith.constant 0.000000e+00 : f32
      %13 = vector.broadcast %cst_10 : f32 to vector<8x128xf32>
      %14 = arith.maximumf %12, %13 : vector<8x128xf32>
      %c0_11 = arith.constant 0 : index
      %c0_12 = arith.constant 0 : index
      %15 = vector.load %arg6[%c0_11, %c0_12] : memref<8x128xf32, #tpu.memory_space<vmem>>, vector<8x128xf32>
      tpu.vector_store %arg6[%c0_11, %c0_12], %14 {strides = array<i32>} : memref<8x128xf32, #tpu.memory_space<vmem>>, vector<8x128xf32>,
    } else {
    }
    return
  }
  func.func @transform_0(%arg0: i32, %arg1: i32, %arg2: i32) -> (i32, i32) {
    %c0_i32 = arith.constant 0 : i32
    return %arg0, %arg2 : i32, i32
  }
  func.func @transform_1(%arg0: i32, %arg1: i32, %arg2: i32) -> (i32, i32) {
    %c0_i32 = arith.constant 0 : i32
    return %arg2, %arg1 : i32, i32
  }
  func.func @transform_2(%arg0: i32, %arg1: i32, %arg2: i32) -> (i32, i32) {
    %c0_i32 = arith.constant 0 : i32
    %c0_i32_0 = arith.constant 0 : i32
    return %c0_i32, %arg1 : i32, i32
  }
  func.func @transform_3(%arg0: i32, %arg1: i32, %arg2: i32) -> (i32, i32) {
    %c0_i32 = arith.constant 0 : i32
    return %arg0, %arg1 : i32, i32
  }
}

</mosaic_0001>

<llo_original>
// kernel: tpu_custom_call.1
$region0: #{tpu_custom_call.1}
  #allocation0 [shape = 'u32[]', space=smem, size = 0x4, offset = 0x4, fixed_abs, tag = 'smem constant byte address 0x4 - core index']
  #allocation1 [shape = 'u32[72,128]{1,0:T(1,128)}', space=vmem, size = 0x9000, scoped, tag = 'internal scratch']
  %s0 = inlined_call_operand.hbm [shape: f32[8,128], index: 0, kind: input, shape index: {}]
  %s1 = inlined_call_operand.hbm [shape: f32[128,128], index: 1, kind: input, shape index: {}]
  %s2 = inlined_call_operand.vmem [shape: f32[1,128], index: 2, kind: input, shape index: {}]
  %s3 = inlined_call_operand.hbm [shape: f32[8,128], index: 3, kind: output, shape index: {}]
  %s4 = sld [smem:[#allocation0]]
  $region42: #{tpu_custom_call.1} parent=0
    _
  %s6 = ssub.s32 1, %s4
  %s7 = scalar_select 0, %s6, %s4
  $region1: #{tpu_custom_call.1} parent=0
    #allocation2 [shape = 'u8[4096]{0}', space=vmem, size = 0x1000, scoped, tag = 'input window, operand 0, single buffered']
    #allocation3 [shape = 's32[1]{0}', space=sflag, size = 0x4, scoped, tag = 'scoped memory for tpu_custom_call.1']
    #allocation4 [shape = 's32[1]{0}', space=sflag, size = 0x4, scoped, tag = 'scoped memory for tpu_custom_call.1']
    #allocation5 [shape = 'u8[65536]{0}', space=vmem, size = 0x10000, scoped, tag = 'input window, operand 1, single buffered']
    #allocation6 [shape = 's32[1]{0}', space=sflag, size = 0x4, scoped, tag = 'scoped memory for tpu_custom_call.1']
    #allocation7 [shape = 'u8[4096]{0}', space=vmem, size = 0x1000, scoped, tag = 'output window, operand 0, single buffered']
    %8 = vsyncpa [#allocation3], 0
    %9 = vsyncpa [#allocation6], 0
    %10 = vsyncpa [#allocation4], 0
    // Predicated region
    $region2: #{tpu_custom_call.1} parent=1 // pred_check
      _
    $region3: #{tpu_custom_call.1} parent=1 // pred_check_branch
      %12 = sbr.rel (0) target = $region5
    $region4: #{tpu_custom_call.1} parent=1 // pred_region
      %14 = vsyncadd [#allocation3], 0
      %s16 = sshll.u32 %s0, 4
      %s17 = int_to_ptr.hbm [resolvable:$true] %s16
      %s18 = sshll.u32 [#allocation2], 4
      %s19 = int_to_ptr.vmem [resolvable:$true] %s18
      %21 = dma.hbm_to_vmem [thread:$0]  %s17, 128, %s19, [#allocation3]
    $region5: #{tpu_custom_call.1} parent=1 // pred_fallthru
      _
    // Predicated region
    $region6: #{tpu_custom_call.1} parent=1 // pred_check
      _
    $region7: #{tpu_custom_call.1} parent=1 // pred_check_branch
      %23 = sbr.rel (0) target = $region9
    $region8: #{tpu_custom_call.1} parent=1 // pred_region
      %25 = vsyncadd [#allocation6], 0
      %s26 = sshll.u32 %s1, 4
      %s27 = int_to_ptr.hbm [resolvable:$true] %s26
      %s28 = sshll.u32 [#allocation5], 4
      %s29 = int_to_ptr.vmem [resolvable:$true] %s28
      %34 = dma.hbm_to_vmem [thread:$0]  %s27, 2048, %s29, [#allocation6], 128, 128, 8
    $region9: #{tpu_custom_call.1} parent=1 // pred_fallthru
      _
    // Predicated region
    $region10: #{tpu_custom_call.1} parent=1 // pred_check
      _
    $region11: #{tpu_custom_call.1} parent=1 // pred_check_branch
      %36 = sbr.rel (0) target = $region13
    $region12: #{tpu_custom_call.1} parent=1 // pred_region
      _
    $region13: #{tpu_custom_call.1} parent=1 // pred_fallthru
      _
    // Predicated region
    $region14: #{tpu_custom_call.1} parent=1 // pred_check
      _
    $region15: #{tpu_custom_call.1} parent=1 // pred_check_branch
      %38 = sbr.rel (0) target = $region17
    $region16: #{tpu_custom_call.1} parent=1 // pred_region
      %40 = dma.done [#allocation3], 128
    $region17: #{tpu_custom_call.1} parent=1 // pred_fallthru
      _
    // Predicated region
    $region18: #{tpu_custom_call.1} parent=1 // pred_check
      _
    $region19: #{tpu_custom_call.1} parent=1 // pred_check_branch
      %42 = sbr.rel (0) target = $region21
    $region20: #{tpu_custom_call.1} parent=1 // pred_region
      %44 = dma.done [#allocation6], 2048
    $region21: #{tpu_custom_call.1} parent=1 // pred_fallthru
      _
    %v45 = vld [vmem:[#allocation2] sm:$0xff]
    %v46 = vld [vmem:[#allocation5] sm:$0xff]
    %v47 = vld [vmem:[#allocation5 + $0x8] sm:$0xff]
    %v48 = vld [vmem:[#allocation5 + $0x10] sm:$0xff]
    %v49 = vld [vmem:[#allocation5 + $0x18] sm:$0xff]
    %v50 = vld [vmem:[#allocation5 + $0x20] sm:$0xff]
    %v51 = vld [vmem:[#allocation5 + $0x28] sm:$0xff]
    %v52 = vld [vmem:[#allocation5 + $0x30] sm:$0xff]
    %v53 = vld [vmem:[#allocation5 + $0x38] sm:$0xff]
    %v54 = vld [vmem:[#allocation5 + $0x40] sm:$0xff]
    %v55 = vld [vmem:[#allocation5 + $0x48] sm:$0xff]
    %v56 = vld [vmem:[#allocation5 + $0x50] sm:$0xff]
    %v57 = vld [vmem:[#allocation5 + $0x58] sm:$0xff]
    %v58 = vld [vmem:[#allocation5 + $0x60] sm:$0xff]
    %v59 = vld [vmem:[#allocation5 + $0x68] sm:$0xff]
    %v60 = vld [vmem:[#allocation5 + $0x70] sm:$0xff]
    %v61 = vld [vmem:[#allocation5 + $0x78] sm:$0xff]
    %62 = vmatpush.msra.mxu0 %v61
    %63 = vmatpush.msra.mxu0 %v60
    %64 = vmatpush.msra.mxu0 %v59
    %65 = vmatpush.msra.mxu0 %v58
    %66 = vmatpush.msra.mxu0 %v57
    %67 = vmatpush.msra.mxu0 %v56
    %68 = vmatpush.msra.mxu0 %v55
    %69 = vmatpush.msra.mxu0 %v54
    %70 = vmatpush.msra.mxu0 %v53
    %71 = vmatpush.msra.mxu0 %v52
    %72 = vmatpush.msra.mxu0 %v51
    %73 = vmatpush.msra.mxu0 %v50
    %74 = vmatpush.msra.mxu0 %v49
    %75 = vmatpush.msra.mxu0 %v48
    %76 = vmatpush.msra.mxu0 %v47
    %77 = vmatpush.msra.mxu0 %v46
    %78 = vmatmul.f32.gmra.mxu0 %v45
    %v79 = vpop.f32.mrf.mxu0
    %v80 = vadd.f32 0.0, %v79
    %81 = vdwg.mxu0
    %p82 = scmp.eq.s32.totalorder 0, 0
    // Predicated region
    $region22: #{tpu_custom_call.1} parent=1 // pred_check
      %p83 = pneg %p82
    $region23: #{tpu_custom_call.1} parent=1 // pred_check_branch
      %85 = sbr.rel (%p83) target = $region25
    $region24: #{tpu_custom_call.1} parent=1 // pred_region
      %v86 = vld [vmem:[%s2] sm:$0x1]
      %v88 = vperm.slane %v86, 0
      %v90 = vadd.f32 %v80, %v88
      %91 = vst [vmem:[#allocation7] sm:$0xff] %v90
    $region25: #{tpu_custom_call.1} parent=1 // pred_fallthru
      _
    %p92 = scmp.ne.s32.totalorder 0, 0
    // Predicated region
    $region26: #{tpu_custom_call.1} parent=1 // pred_check
      %p93 = pneg %p92
    $region27: #{tpu_custom_call.1} parent=1 // pred_check_branch
      %95 = sbr.rel (%p93) target = $region29
    $region28: #{tpu_custom_call.1} parent=1 // pred_region
      %v96 = vld [vmem:[#allocation7] sm:$0xff]
      %v97 = vadd.f32 %v96, %v80
      %98 = vst [vmem:[#allocation7] sm:$0xff] %v97
    $region29: #{tpu_custom_call.1} parent=1 // pred_fallthru
      _
    // Predicated region
    $region30: #{tpu_custom_call.1} parent=1 // pred_check
      %p99 = pneg %p82
    $region31: #{tpu_custom_call.1} parent=1 // pred_check_branch
      %101 = sbr.rel (%p99) target = $region33
    $region32: #{tpu_custom_call.1} parent=1 // pred_region
      %v102 = vld [vmem:[#allocation7] sm:$0xff]
      %v103 = vmax.f32 %v102, 0.0
      %104 = vst [vmem:[#allocation7] sm:$0xff] %v103
    $region33: #{tpu_custom_call.1} parent=1 // pred_fallthru
      _
    // Predicated region
    $region34: #{tpu_custom_call.1} parent=1 // pred_check
      _
    $region35: #{tpu_custom_call.1} parent=1 // pred_check_branch
      %106 = sbr.rel (0) target = $region37
    $region36: #{tpu_custom_call.1} parent=1 // pred_region
      %108 = vsyncadd [#allocation4], 0
      %s110 = sshll.u32 [#allocation7], 4
      %s111 = int_to_ptr.vmem [resolvable:$true] %s110
      %s112 = sshll.u32 %s3, 4
      %s113 = int_to_ptr.hbm [resolvable:$true] %s112
      %115 = dma.vmem_to_hbm [thread:$0]  %s111, 128, %s113, [#allocation4]
    $region37: #{tpu_custom_call.1} parent=1 // pred_fallthru
      _
    // Predicated region
    $region38: #{tpu_custom_call.1} parent=1 // pred_check
      _
    $region39: #{tpu_custom_call.1} parent=1 // pred_check_branch
      %117 = sbr.rel (0) target = $region41
    $region40: #{tpu_custom_call.1} parent=1 // pred_region
      %119 = dma.done [#allocation4], 128
    $region41: #{tpu_custom_call.1} parent=1 // pred_fallthru
      _
    %120 = vsyncpa [#allocation3], 1
    %121 = vsyncpa [#allocation6], 1
    %122 = vsyncpa [#allocation4], 1

</llo_original>
